<compile_context>
chip_gen: v7x
topology: tpu7x:2x2x1
jax: 0.10.0
libtpu: 0.0.40
codegen_flags: <defaults>
</compile_context>

<pallas_src>
import jax
import jax.numpy as jnp
from jax import lax
from jax.experimental import pallas as pl
from jax.experimental.pallas import tpu as pltpu

LEAKY_SLOPE = 0.01  # F.leaky_relu default negative_slope
BN_EPS = 1e-5       # nn.BatchNorm2d default eps


def _leaky(x):
    return jnp.where(x > 0, x, LEAKY_SLOPE * x)


def _round_up(a, b):
    return ((a + b - 1) // b) * b


def value_head_kernel(x_ref, a_ref, d_ref, w1_ref, b1_ref, w2_ref, b2_ref,
                      o_ref, z_ref):
    # x_ref : (TB, Cin*HW)      VMEM  native NCHW-flattened batch tile (bf16)
    # a_ref : (Cout, Cin)       SMEM  conv1x1 weight with BN scale folded in (f32)
    # d_ref : (Cout,)           SMEM  conv bias + BN shift folded in (f32)
    # w1_ref: (Cout*HW, HID)    VMEM  dense1 weight, PyTorch flatten order (bf16)
    # b1_ref: (1, HID)          VMEM  f32
    # w2_ref: (1, HID)          VMEM  dense2 weight as a row vector (f32)
    # b2_ref: (1,)              SMEM  dense2 bias (f32 scalar)
    # o_ref : (1, 1, TB)        VMEM  lane-dense output block
    # z_ref : (TB, Cout*HW)     VMEM  scratch: leaky(affine(x)), dense1 input
    cout, cin = a_ref.shape
    hw = x_ref.shape[1] // cin

    # conv1x1 + folded eval-BN on the VPU (f32 math — v5e-safe).
    # Input-channel-major loop: each x slab is loaded once and feeds every
    # output channel, so vld pressure is minimized.
    zs = [None] * cout
    for ci in range(cin):
        xc = x_ref[:, ci * hw:(ci + 1) * hw].astype(jnp.float32)   # (TB, HW)
        for c in range(cout):
            t = a_ref[c, ci] * xc
            zs[c] = t if zs[c] is None else zs[c] + t
    for c in range(cout):
        z_ref[:, c * hw:(c + 1) * hw] = _leaky(zs[c] + d_ref[c]).astype(z_ref.dtype)

    # dense1: one MXU matmul over the full K = Cout*HW, f32 accumulation.
    h = jnp.dot(z_ref[...], w1_ref[...], preferred_element_type=jnp.float32)
    h = _leaky(h + b1_ref[...])                                     # (TB, HID)

    # dense2 as a trans_b matmul -> lane-dense (1, TB) row, then tanh.
    v = lax.dot_general(w2_ref[...], h, (((1,), (1,)), ((), ())),
                        preferred_element_type=jnp.float32)
    v = v + b2_ref[0]                                               # (1, TB)
    o_ref[0] = jnp.tanh(v).astype(o_ref.dtype)


def prepare_value_head_params(params, compute_dtype=jnp.bfloat16):
    """One-time parameter glue (per parameter set):
      * fold conv1x1 + eval-mode BN into a per-channel affine (A, d),
      * transpose dense1's weight to (Cout*HW, HID) — this is exactly the
        PyTorch NCHW flatten order, so no permutation beyond a transpose,
      * cast the dense1 weight to `compute_dtype` (bf16 by default)."""
    conv_w = params["conv_w"]
    Cout, Cin = conv_w.shape[0], conv_w.shape[1]
    HID, mix = params["w1"].shape

    bn_scale = params["bn_gamma"] / jnp.sqrt(params["bn_var"] + BN_EPS)
    A = bn_scale[:, None] * conv_w.reshape(Cout, Cin)                  # (Cout, Cin)
    d = bn_scale * (params["conv_b"] - params["bn_mean"]) + params["bn_beta"]

    return {
        "A": A.astype(jnp.float32),
        "d": d.astype(jnp.float32),
        "w1r": jnp.transpose(params["w1"]).astype(compute_dtype),      # (mix, HID)
        "b1": params["b1"].reshape(1, HID).astype(jnp.float32),
        "w2": params["w2"].reshape(1, HID).astype(jnp.float32),
        "b2": params["b2"].reshape(1).astype(jnp.float32),
    }


def value_head_forward(x_nchw, prepared, batch_tile=512):
    """Pallas forward for ValueHead.  x_nchw: (N, Cin, H, W)."""
    N, Cin, H, W = x_nchw.shape
    A, d = prepared["A"], prepared["d"]
    w1r, b1 = prepared["w1r"], prepared["b1"]
    w2, b2 = prepared["w2"], prepared["b2"]
    K, HID = w1r.shape
    HW = H * W
    Cout = K // HW
    assert K == Cout * HW and A.shape == (Cout, Cin)

    compute_dtype = w1r.dtype

    # Free reshape — no transpose, no pad, no extra HBM pass over x.
    # (In a real pipeline the producer should emit `compute_dtype` directly;
    # the cast below is a no-op in that case.)
    xr = x_nchw.reshape(N, Cin * HW)
    if xr.dtype != compute_dtype:
        xr = xr.astype(compute_dtype)

    # Batch tile: multiple of 16 (bf16 (16,128) sublane packing), default 512.
    TB = min(_round_up(batch_tile, 16), _round_up(N, 16))
    num_tiles = pl.cdiv(N, TB)
    # v7x megacore: prefer >= 2 tiles so the parallel batch axis feeds both TCs.
    if num_tiles == 1 and N > 32:
        TB = _round_up(pl.cdiv(N, 2), 16)
        num_tiles = pl.cdiv(N, TB)

    out = pl.pallas_call(
        value_head_kernel,
        out_shape=jax.ShapeDtypeStruct((num_tiles, 1, TB), jnp.float32),
        grid=(num_tiles,),
        in_specs=[
            pl.BlockSpec((TB, Cin * HW), lambda i: (i, 0)),            # x tile
            pl.BlockSpec(memory_space=pltpu.MemorySpace.SMEM),         # A
            pl.BlockSpec(memory_space=pltpu.MemorySpace.SMEM),         # d
            pl.BlockSpec((K, HID), lambda i: (0, 0)),                  # w1
            pl.BlockSpec((1, HID), lambda i: (0, 0)),                  # b1
            pl.BlockSpec((1, HID), lambda i: (0, 0)),                  # w2
            pl.BlockSpec(memory_space=pltpu.MemorySpace.SMEM),         # b2
        ],
        # Lane-dense (1, 1, TB) output blocks: unmasked stores + full-lane
        # writeback DMA; one block per grid step so the batch axis stays
        # parallel across TensorCores.
        out_specs=pl.BlockSpec((1, 1, TB), lambda i: (i, 0, 0)),
        scratch_shapes=[pltpu.VMEM((TB, K), compute_dtype)],
        compiler_params=pltpu.CompilerParams(
            dimension_semantics=("parallel",),
            # Explicit scoped-VMEM limit so large batch tiles also compile on
            # v5e (16 MiB default); 32 MiB is safe on v5e/v6e/v7x.
            vmem_limit_bytes=32 * 1024 * 1024),
    )(xr, A, d, w1r, b1, w2, b2)

    # Rows past N in the edge tile are garbage (never read by anyone) — the
    # slice below discards them; rows are independent end-to-end.
    return out.reshape(num_tiles * TB, 1)[:N]


def reference_forward(x, p):
    """Plain-JAX reference matching the PyTorch module (BN in eval mode)."""
    N, Cin, H, W = x.shape
    Cout = p["conv_w"].shape[0]
    y = jnp.einsum("oc,nchw->nohw", p["conv_w"].reshape(Cout, Cin), x)
    y = y + p["conv_b"][None, :, None, None]
    y = ((y - p["bn_mean"][None, :, None, None])
         / jnp.sqrt(p["bn_var"][None, :, None, None] + BN_EPS)
         * p["bn_gamma"][None, :, None, None]
         + p["bn_beta"][None, :, None, None])
    y = _leaky(y)
    y = y.reshape(N, -1)                       # NCHW view(-1, Cout*H*W)
    h = y @ p["w1"].T + p["b1"]
    h = _leaky(h)
    v = h @ p["w2"].T + p["b2"]
    return jnp.tanh(v)


def init_params(key, in_channels, out_channels, hidden, board_shape):
    H, W = board_shape
    mix = out_channels * H * W
    ks = jax.random.split(key, 10)
    f = jnp.float32
    return {
        "conv_w": 0.2 * jax.random.normal(ks[0], (out_channels, in_channels, 1, 1), f),
        "conv_b": 0.1 * jax.random.normal(ks[1], (out_channels,), f),
        "bn_gamma": 1.0 + 0.1 * jax.random.normal(ks[2], (out_channels,), f),
        "bn_beta": 0.1 * jax.random.normal(ks[3], (out_channels,), f),
        "bn_mean": 0.1 * jax.random.normal(ks[4], (out_channels,), f),
        "bn_var": jax.random.uniform(ks[5], (out_channels,), f, 0.5, 1.5),
        "w1": 0.05 * jax.random.normal(ks[6], (hidden, mix), f),
        "b1": 0.05 * jax.random.normal(ks[7], (hidden,), f),
        "w2": 0.1 * jax.random.normal(ks[8], (1, hidden), f),
        "b2": 0.1 * jax.random.normal(ks[9], (1,), f),
    }


if __name__ == "__main__":
    Cin, Cout, H, W, HID = 4, 2, 16, 16, 32
    key = jax.random.PRNGKey(0)
    kp, kx1, kx2 = jax.random.split(key, 3)
    params = init_params(kp, Cin, Cout, HID, (H, W))

    prep_bf16 = prepare_value_head_params(params, compute_dtype=jnp.bfloat16)
    prep_f32 = prepare_value_head_params(params, compute_dtype=jnp.float32)

    # Small test (batch=2): single tile with a ragged edge.
    x = jax.random.normal(kx1, (2, Cin, H, W), jnp.float32)
    ref = reference_forward(x, params)
    out = value_head_forward(x, prep_bf16)
    jax.block_until_ready(out)
    assert out.shape == (2, 1), out.shape
    assert jnp.allclose(out, ref, atol=1e-2, rtol=1e-2), (out, ref)

    # Same kernel in full f32 (tight tolerance).
    out_f32 = value_head_forward(x, prep_f32)
    jax.block_until_ready(out_f32)
    assert jnp.allclose(out_f32, ref, atol=5e-3, rtol=5e-3), (out_f32, ref)

    # Multi-tile ragged test (batch=20, tile=8 -> TB=16, 2 tiles, partial edge
    # block, no host-side padding).
    x2 = jax.random.normal(kx2, (20, Cin, H, W), jnp.float32)
    ref2 = reference_forward(x2, params)
    out2 = value_head_forward(x2, prep_bf16, batch_tile=8)
    jax.block_until_ready(out2)
    assert out2.shape == (20, 1), out2.shape
    assert jnp.allclose(out2, ref2, atol=1e-2, rtol=1e-2), (out2, ref2)

    print("KERNEL_OK")
</pallas_src>

<mosaic_0001>
module attributes {stable_mosaic.version = 11 : i64} {
  func.func @value_head_kernel(%arg0: i32, %arg1: memref<16x1024xbf16, #tpu.memory_space<vmem>>, %arg2: memref<2x4xf32, #tpu.memory_space<smem>>, %arg3: memref<2xf32, #tpu.memory_space<smem>>, %arg4: memref<512x32xbf16, #tpu.memory_space<vmem>>, %arg5: memref<1x32xf32, #tpu.memory_space<vmem>>, %arg6: memref<1x32xf32, #tpu.memory_space<vmem>>, %arg7: memref<1xf32, #tpu.memory_space<smem>>, %arg8: memref<1x1x16xf32, #tpu.memory_space<vmem>>, %arg9: memref<16x512xbf16, #tpu.memory_space<vmem>>) attributes {dimension_semantics = [#tpu.dimension_semantics<parallel>], iteration_bounds = array<i64: 1>, scalar_prefetch = 0 : i64, scratch_operands = 1 : i64, tpu.core_type = #tpu.core_type<tc>, window_params = [{transform_indices = @transform_0, window_bounds = array<i64: 16, 1024>}, {transform_indices = @transform_1, window_bounds = array<i64: 2, 4>}, {transform_indices = @transform_2, window_bounds = array<i64: 2>}, {pipeline_mode = #tpu.pipeline_mode<synchronous>, transform_indices = @transform_3, window_bounds = array<i64: 512, 32>}, {pipeline_mode = #tpu.pipeline_mode<synchronous>, transform_indices = @transform_4, window_bounds = array<i64: 1, 32>}, {pipeline_mode = #tpu.pipeline_mode<synchronous>, transform_indices = @transform_5, window_bounds = array<i64: 1, 32>}, {transform_indices = @transform_6, window_bounds = array<i64: 1>}, {transform_indices = @transform_7, window_bounds = array<i64: 1, 1, 16>}]} {
    %c0 = arith.constant 0 : index
    %c0_0 = arith.constant 0 : index
    %0 = vector.load %arg1[%c0, %c0_0] : memref<16x1024xbf16, #tpu.memory_space<vmem>>, vector<16x256xbf16>
    %1 = arith.extf %0 : vector<16x256xbf16> to vector<16x256xf32>
    %c0_1 = arith.constant 0 : index
    %c0_2 = arith.constant 0 : index
    %2 = memref.load %arg2[%c0_1, %c0_2] : memref<2x4xf32, #tpu.memory_space<smem>>
    %3 = vector.broadcast %2 : f32 to vector<16x256xf32>
    %4 = arith.mulf %3, %1 : vector<16x256xf32>
    %c1 = arith.constant 1 : index
    %c0_3 = arith.constant 0 : index
    %5 = memref.load %arg2[%c1, %c0_3] : memref<2x4xf32, #tpu.memory_space<smem>>
    %6 = vector.broadcast %5 : f32 to vector<16x256xf32>
    %7 = arith.mulf %6, %1 : vector<16x256xf32>
    %c0_4 = arith.constant 0 : index
    %c256 = arith.constant 256 : index
    %8 = vector.load %arg1[%c0_4, %c256] : memref<16x1024xbf16, #tpu.memory_space<vmem>>, vector<16x256xbf16>
    %9 = arith.extf %8 : vector<16x256xbf16> to vector<16x256xf32>
    %c0_5 = arith.constant 0 : index
    %c1_6 = arith.constant 1 : index
    %10 = memref.load %arg2[%c0_5, %c1_6] : memref<2x4xf32, #tpu.memory_space<smem>>
    %11 = vector.broadcast %10 : f32 to vector<16x256xf32>
    %12 = arith.mulf %11, %9 : vector<16x256xf32>
    %13 = arith.addf %4, %12 : vector<16x256xf32>
    %c1_7 = arith.constant 1 : index
    %c1_8 = arith.constant 1 : index
    %14 = memref.load %arg2[%c1_7, %c1_8] : memref<2x4xf32, #tpu.memory_space<smem>>
    %15 = vector.broadcast %14 : f32 to vector<16x256xf32>
    %16 = arith.mulf %15, %9 : vector<16x256xf32>
    %17 = arith.addf %7, %16 : vector<16x256xf32>
    %c0_9 = arith.constant 0 : index
    %c512 = arith.constant 512 : index
    %18 = vector.load %arg1[%c0_9, %c512] : memref<16x1024xbf16, #tpu.memory_space<vmem>>, vector<16x256xbf16>
    %19 = arith.extf %18 : vector<16x256xbf16> to vector<16x256xf32>
    %c0_10 = arith.constant 0 : index
    %c2 = arith.constant 2 : index
    %20 = memref.load %arg2[%c0_10, %c2] : memref<2x4xf32, #tpu.memory_space<smem>>
    %21 = vector.broadcast %20 : f32 to vector<16x256xf32>
    %22 = arith.mulf %21, %19 : vector<16x256xf32>
    %23 = arith.addf %13, %22 : vector<16x256xf32>
    %c1_11 = arith.constant 1 : index
    %c2_12 = arith.constant 2 : index
    %24 = memref.load %arg2[%c1_11, %c2_12] : memref<2x4xf32, #tpu.memory_space<smem>>
    %25 = vector.broadcast %24 : f32 to vector<16x256xf32>
    %26 = arith.mulf %25, %19 : vector<16x256xf32>
    %27 = arith.addf %17, %26 : vector<16x256xf32>
    %c0_13 = arith.constant 0 : index
    %c768 = arith.constant 768 : index
    %28 = vector.load %arg1[%c0_13, %c768] : memref<16x1024xbf16, #tpu.memory_space<vmem>>, vector<16x256xbf16>
    %29 = arith.extf %28 : vector<16x256xbf16> to vector<16x256xf32>
    %c0_14 = arith.constant 0 : index
    %c3 = arith.constant 3 : index
    %30 = memref.load %arg2[%c0_14, %c3] : memref<2x4xf32, #tpu.memory_space<smem>>
    %31 = vector.broadcast %30 : f32 to vector<16x256xf32>
    %32 = arith.mulf %31, %29 : vector<16x256xf32>
    %33 = arith.addf %23, %32 : vector<16x256xf32>
    %c1_15 = arith.constant 1 : index
    %c3_16 = arith.constant 3 : index
    %34 = memref.load %arg2[%c1_15, %c3_16] : memref<2x4xf32, #tpu.memory_space<smem>>
    %35 = vector.broadcast %34 : f32 to vector<16x256xf32>
    %36 = arith.mulf %35, %29 : vector<16x256xf32>
    %37 = arith.addf %27, %36 : vector<16x256xf32>
    %c0_17 = arith.constant 0 : index
    %38 = memref.load %arg3[%c0_17] : memref<2xf32, #tpu.memory_space<smem>>
    %39 = vector.broadcast %38 : f32 to vector<16x256xf32>
    %40 = arith.addf %33, %39 : vector<16x256xf32>
    %cst = arith.constant 0.000000e+00 : f32
    %41 = vector.broadcast %cst : f32 to vector<16x256xf32>
    %42 = arith.cmpf ogt, %40, %41 : vector<16x256xf32>
    %cst_18 = arith.constant 0.00999999977 : f32
    %43 = vector.broadcast %cst_18 : f32 to vector<16x256xf32>
    %44 = arith.mulf %43, %40 : vector<16x256xf32>
    %45 = arith.select %42, %40, %44 : vector<16x256xi1>, vector<16x256xf32>
    %46 = arith.truncf %45 : vector<16x256xf32> to vector<16x256xbf16>
    %c0_19 = arith.constant 0 : index
    %c0_20 = arith.constant 0 : index
    %47 = vector.load %arg9[%c0_19, %c0_20] : memref<16x512xbf16, #tpu.memory_space<vmem>>, vector<16x256xbf16>
    tpu.vector_store %arg9[%c0_19, %c0_20], %46 {strides = array<i32>} : memref<16x512xbf16, #tpu.memory_space<vmem>>, vector<16x256xbf16>,
    %c1_21 = arith.constant 1 : index
    %48 = memref.load %arg3[%c1_21] : memref<2xf32, #tpu.memory_space<smem>>
    %49 = vector.broadcast %48 : f32 to vector<16x256xf32>
    %50 = arith.addf %37, %49 : vector<16x256xf32>
    %cst_22 = arith.constant 0.000000e+00 : f32
    %51 = vector.broadcast %cst_22 : f32 to vector<16x256xf32>
    %52 = arith.cmpf ogt, %50, %51 : vector<16x256xf32>
    %cst_23 = arith.constant 0.00999999977 : f32
    %53 = vector.broadcast %cst_23 : f32 to vector<16x256xf32>
    %54 = arith.mulf %53, %50 : vector<16x256xf32>
    %55 = arith.select %52, %50, %54 : vector<16x256xi1>, vector<16x256xf32>
    %56 = arith.truncf %55 : vector<16x256xf32> to vector<16x256xbf16>
    %c0_24 = arith.constant 0 : index
    %c256_25 = arith.constant 256 : index
    %57 = vector.load %arg9[%c0_24, %c256_25] : memref<16x512xbf16, #tpu.memory_space<vmem>>, vector<16x256xbf16>
    tpu.vector_store %arg9[%c0_24, %c256_25], %56 {strides = array<i32>} : memref<16x512xbf16, #tpu.memory_space<vmem>>, vector<16x256xbf16>,
    %c0_26 = arith.constant 0 : index
    %c0_27 = arith.constant 0 : index
    %58 = vector.load %arg9[%c0_26, %c0_27] : memref<16x512xbf16, #tpu.memory_space<vmem>>, vector<16x512xbf16>
    %c0_28 = arith.constant 0 : index
    %c0_29 = arith.constant 0 : index
    %59 = vector.load %arg4[%c0_28, %c0_29] : memref<512x32xbf16, #tpu.memory_space<vmem>>, vector<512x32xbf16>
    %cst_30 = arith.constant dense<0.000000e+00> : vector<16x32xf32>
    %60 = tpu.matmul %58, %59, %cst_30 {dimension_numbers = #tpu.dot_dimension_numbers<[1], [0], [0], [1], [0, 0, 1, 1], [], []>} : vector<16x512xbf16>, vector<512x32xbf16>, vector<16x32xf32> -> vector<16x32xf32>
    %c0_31 = arith.constant 0 : index
    %c0_32 = arith.constant 0 : index
    %61 = vector.load %arg5[%c0_31, %c0_32] : memref<1x32xf32, #tpu.memory_space<vmem>>, vector<1x32xf32>
    %62 = vector.broadcast %61 : vector<1x32xf32> to vector<16x32xf32>
    %63 = arith.addf %60, %62 : vector<16x32xf32>
    %cst_33 = arith.constant 0.000000e+00 : f32
    %64 = vector.broadcast %cst_33 : f32 to vector<16x32xf32>
    %65 = arith.cmpf ogt, %63, %64 : vector<16x32xf32>
    %cst_34 = arith.constant 0.00999999977 : f32
    %66 = vector.broadcast %cst_34 : f32 to vector<16x32xf32>
    %67 = arith.mulf %66, %63 : vector<16x32xf32>
    %68 = arith.select %65, %63, %67 : vector<16x32xi1>, vector<16x32xf32>
    %c0_35 = arith.constant 0 : index
    %c0_36 = arith.constant 0 : index
    %69 = vector.load %arg6[%c0_35, %c0_36] : memref<1x32xf32, #tpu.memory_space<vmem>>, vector<1x32xf32>
    %cst_37 = arith.constant dense<0.000000e+00> : vector<1x16xf32>
    %70 = tpu.matmul %69, %68, %cst_37 {dimension_numbers = #tpu.dot_dimension_numbers<[1], [1], [0], [0], [0, 0, 1, 0], [], []>} : vector<1x32xf32>, vector<16x32xf32>, vector<1x16xf32> -> vector<1x16xf32>
    %c0_38 = arith.constant 0 : index
    %71 = memref.load %arg7[%c0_38] : memref<1xf32, #tpu.memory_space<smem>>
    %72 = vector.broadcast %71 : f32 to vector<1x16xf32>
    %73 = arith.addf %70, %72 : vector<1x16xf32>
    %74 = math.tanh %73 : vector<1x16xf32>
    %c0_39 = arith.constant 0 : index
    %c0_40 = arith.constant 0 : index
    %c0_41 = arith.constant 0 : index
    %75 = vector.load %arg8[%c0_39, %c0_40, %c0_41] : memref<1x1x16xf32, #tpu.memory_space<vmem>>, vector<1x1x16xf32>
    %76 = vector.shape_cast %75 : vector<1x1x16xf32> to vector<1x16xf32>
    %77 = vector.shape_cast %74 : vector<1x16xf32> to vector<1x1x16xf32>
    tpu.vector_store %arg8[%c0_39, %c0_40, %c0_41], %77 {strides = array<i32>} : memref<1x1x16xf32, #tpu.memory_space<vmem>>, vector<1x1x16xf32>,
    return
  }
  func.func @transform_0(%arg0: i32) -> (i32, i32) {
    %c0_i32 = arith.constant 0 : i32
    %c0_i32_0 = arith.constant 0 : i32
    return %arg0, %c0_i32 : i32, i32
  }
  func.func @transform_1(%arg0: i32) -> (i32, i32) {
    %c0_i32 = arith.constant 0 : i32
    %c0_i32_0 = arith.constant 0 : i32
    %c0_i32_1 = arith.constant 0 : i32
    return %c0_i32, %c0_i32_0 : i32, i32
  }
  func.func @transform_2(%arg0: i32) -> i32 {
    %c0_i32 = arith.constant 0 : i32
    %c0_i32_0 = arith.constant 0 : i32
    return %c0_i32 : i32
  }
  func.func @transform_3(%arg0: i32) -> (i32, i32) {
    %c0_i32 = arith.constant 0 : i32
    %c0_i32_0 = arith.constant 0 : i32
    %c0_i32_1 = arith.constant 0 : i32
    return %c0_i32, %c0_i32_0 : i32, i32
  }
  func.func @transform_4(%arg0: i32) -> (i32, i32) {
    %c0_i32 = arith.constant 0 : i32
    %c0_i32_0 = arith.constant 0 : i32
    %c0_i32_1 = arith.constant 0 : i32
    return %c0_i32, %c0_i32_0 : i32, i32
  }
  func.func @transform_5(%arg0: i32) -> (i32, i32) {
    %c0_i32 = arith.constant 0 : i32
    %c0_i32_0 = arith.constant 0 : i32
    %c0_i32_1 = arith.constant 0 : i32
    return %c0_i32, %c0_i32_0 : i32, i32
  }
  func.func @transform_6(%arg0: i32) -> i32 {
    %c0_i32 = arith.constant 0 : i32
    %c0_i32_0 = arith.constant 0 : i32
    return %c0_i32 : i32
  }
  func.func @transform_7(%arg0: i32) -> (i32, i32, i32) {
    %c0_i32 = arith.constant 0 : i32
    %c0_i32_0 = arith.constant 0 : i32
    %c0_i32_1 = arith.constant 0 : i32
    return %arg0, %c0_i32, %c0_i32_0 : i32, i32, i32
  }
}

</mosaic_0001>

<llo_original>
// kernel: tpu_custom_call.1
$region0: #{tpu_custom_call.1}
  #allocation0 [shape = 'u32[]', space=smem, size = 0x4, offset = 0x4, fixed_abs, tag = 'smem constant byte address 0x4 - core index']
  #allocation1 [shape = 'u32[144,128]{1,0:T(1,128)}', space=vmem, size = 0x12000, scoped, tag = 'internal scratch']
  #allocation2 [shape = 'bf16[16,512]{1,0:T(16,128)(2,1)}', space=vmem, size = 0x4000, scoped, tag = 'scratch operand']
  #allocation3 [shape = 'f32[1]{0:T(128)S(6)}', space=smem, size = 0x200, scoped, tag = 'scoped memory for tpu_custom_call.1']
  %s0 = inlined_call_operand.vmem [shape: bf16[2,1024], index: 0, kind: input, shape index: {}]
  %s1 = inlined_call_operand.vmem [shape: f32[2,4], index: 1, kind: input, shape index: {}]
  %s2 = inlined_call_operand.vmem [shape: f32[2], index: 2, kind: input, shape index: {}]
  %s3 = inlined_call_operand.vmem [shape: bf16[512,32], index: 3, kind: input, shape index: {}]
  %s4 = inlined_call_operand.vmem [shape: f32[1,32], index: 4, kind: input, shape index: {}]
  %s5 = inlined_call_operand.vmem [shape: f32[1,32], index: 5, kind: input, shape index: {}]
  %s6 = inlined_call_operand.<no memory space> [shape: f32[1], index: 6, kind: input, shape index: {}]
  %s7 = inlined_call_operand.hbm [shape: f32[1,1,16], index: 7, kind: output, shape index: {}]
  %s8 = sld [smem:[#allocation0]]
  $region46: #{tpu_custom_call.1} parent=0
    _
  %s10 = ssub.s32 1, %s8
  %s11 = scalar_select 0, %s10, %s8
  %12 = sst [smem:[#allocation3]] %s6
  $region1: #{tpu_custom_call.1} parent=0
    #allocation4 [shape = 'u8[1024]{0}', space=smem, size = 0x400, scoped, tag = 'input window, operand 1, single buffered']
    #allocation5 [shape = 's32[1]{0}', space=sflag, size = 0x4, scoped, tag = 'scoped memory for tpu_custom_call.1']
    #allocation6 [shape = 's32[1]{0}', space=sflag, size = 0x4, scoped, tag = 'scoped memory for tpu_custom_call.1']
    #allocation7 [shape = 'u8[512]{0}', space=smem, size = 0x200, scoped, tag = 'input window, operand 2, single buffered']
    #allocation8 [shape = 's32[1]{0}', space=sflag, size = 0x4, scoped, tag = 'scoped memory for tpu_custom_call.1']
    #allocation9 [shape = 'u8[512]{0}', space=vmem, size = 0x400, scoped, tag = 'output window, operand 0, single buffered']
    %13 = vsyncpa [#allocation6], 0
    %14 = vsyncpa [#allocation8], 0
    %15 = vsyncpa [#allocation5], 0
    // Predicated region
    $region2: #{tpu_custom_call.1} parent=1 // pred_check
      _
    $region3: #{tpu_custom_call.1} parent=1 // pred_check_branch
      %17 = sbr.rel (0) target = $region5
    $region4: #{tpu_custom_call.1} parent=1 // pred_region
      _
    $region5: #{tpu_custom_call.1} parent=1 // pred_fallthru
      _
    // Predicated region
    $region6: #{tpu_custom_call.1} parent=1 // pred_check
      _
    $region7: #{tpu_custom_call.1} parent=1 // pred_check_branch
      %19 = sbr.rel (0) target = $region9
    $region8: #{tpu_custom_call.1} parent=1 // pred_region
      %s21 = ssub.s32 32, 32
      %22 = vsyncadd [#allocation6], %s21
      %s24 = sshll.u32 %s1, 4
      %s25 = int_to_ptr.vmem [resolvable:$true] %s24
      %27 = dma.vmem_to_smem %s25, 32, [#allocation4], [#allocation6]
    $region9: #{tpu_custom_call.1} parent=1 // pred_fallthru
      _
    // Predicated region
    $region10: #{tpu_custom_call.1} parent=1 // pred_check
      _
    $region11: #{tpu_custom_call.1} parent=1 // pred_check_branch
      %29 = sbr.rel (0) target = $region13
    $region12: #{tpu_custom_call.1} parent=1 // pred_region
      %s31 = ssub.s32 16, 16
      %32 = vsyncadd [#allocation8], %s31
      %s34 = sshll.u32 %s2, 4
      %s35 = int_to_ptr.vmem [resolvable:$true] %s34
      %37 = dma.vmem_to_smem %s35, 16, [#allocation7], [#allocation8]
    $region13: #{tpu_custom_call.1} parent=1 // pred_fallthru
      _
    // Predicated region
    $region14: #{tpu_custom_call.1} parent=1 // pred_check
      _
    $region15: #{tpu_custom_call.1} parent=1 // pred_check_branch
      %39 = sbr.rel (0) target = $region17
    $region16: #{tpu_custom_call.1} parent=1 // pred_region
      _
    $region17: #{tpu_custom_call.1} parent=1 // pred_fallthru
      _
    // Predicated region
    $region18: #{tpu_custom_call.1} parent=1 // pred_check
      _
    $region19: #{tpu_custom_call.1} parent=1 // pred_check_branch
      %41 = sbr.rel (0) target = $region21
    $region20: #{tpu_custom_call.1} parent=1 // pred_region
      _
    $region21: #{tpu_custom_call.1} parent=1 // pred_fallthru
      _
    // Predicated region
    $region22: #{tpu_custom_call.1} parent=1 // pred_check
      _
    $region23: #{tpu_custom_call.1} parent=1 // pred_check_branch
      %43 = sbr.rel (0) target = $region25
    $region24: #{tpu_custom_call.1} parent=1 // pred_region
      _
    $region25: #{tpu_custom_call.1} parent=1 // pred_fallthru
      _
    // Predicated region
    $region26: #{tpu_custom_call.1} parent=1 // pred_check
      _
    $region27: #{tpu_custom_call.1} parent=1 // pred_check_branch
      %45 = sbr.rel (0) target = $region29
    $region28: #{tpu_custom_call.1} parent=1 // pred_region
      _
    $region29: #{tpu_custom_call.1} parent=1 // pred_fallthru
      _
    // Predicated region
    $region30: #{tpu_custom_call.1} parent=1 // pred_check
      _
    $region31: #{tpu_custom_call.1} parent=1 // pred_check_branch
      %47 = sbr.rel (0) target = $region33
    $region32: #{tpu_custom_call.1} parent=1 // pred_region
      %48 = dma.done [#allocation6], 32
    $region33: #{tpu_custom_call.1} parent=1 // pred_fallthru
      _
    // Predicated region
    $region34: #{tpu_custom_call.1} parent=1 // pred_check
      _
    $region35: #{tpu_custom_call.1} parent=1 // pred_check_branch
      %50 = sbr.rel (0) target = $region37
    $region36: #{tpu_custom_call.1} parent=1 // pred_region
      %51 = dma.done [#allocation8], 16
    $region37: #{tpu_custom_call.1} parent=1 // pred_fallthru
      _
    %52 = sfence
    %v54 = vld [vmem:[%s0] sm:$0x3]
    %v55 = vld [vmem:[%s0 + $0x8] sm:$0x3]
    %v56 = vld [vmem:[%s0 + $0x10] sm:$0x3]
    %v57 = vld [vmem:[%s0 + $0x18] sm:$0x3]
    %v58 = vld [vmem:[%s0 + $0x20] sm:$0x3]
    %v59 = vld [vmem:[%s0 + $0x28] sm:$0x3]
    %v60 = vld [vmem:[%s0 + $0x30] sm:$0x3]
    %v61 = vld [vmem:[%s0 + $0x38] sm:$0x3]
    %v62 = vunpack.c.l.bf16 %v54
    %v63 = vunpack.c.l.bf16 %v55
    %v64 = vunpack.c.l.bf16 %v56
    %v65 = vunpack.c.l.bf16 %v57
    %v66 = vunpack.c.l.bf16 %v58
    %v67 = vunpack.c.l.bf16 %v59
    %v68 = vunpack.c.l.bf16 %v60
    %v69 = vunpack.c.l.bf16 %v61
    %s70 = sld [smem:[#allocation4]]
    %v71 = vstv %s70
    %v72 = vmul.f32 %v71, %v62
    %v73 = vmul.f32 %v71, %v63
    %v74 = vmul.f32 %v71, %v64
    %v75 = vmul.f32 %v71, %v65
    %v76 = vmul.f32 %v71, %v66
    %v77 = vmul.f32 %v71, %v67
    %v78 = vmul.f32 %v71, %v68
    %v79 = vmul.f32 %v71, %v69
    %s80 = sld [smem:[#allocation4 + $0x80]]
    %v81 = vstv %s80
    %v82 = vmul.f32 %v81, %v62
    %v83 = vmul.f32 %v81, %v63
    %v84 = vmul.f32 %v81, %v64
    %v85 = vmul.f32 %v81, %v65
    %v86 = vmul.f32 %v81, %v66
    %v87 = vmul.f32 %v81, %v67
    %v88 = vmul.f32 %v81, %v68
    %v89 = vmul.f32 %v81, %v69
    %v90 = vld [vmem:[%s0 + $0x2] sm:$0x3]
    %v91 = vld [vmem:[%s0 + $0xa] sm:$0x3]
    %v92 = vld [vmem:[%s0 + $0x12] sm:$0x3]
    %v93 = vld [vmem:[%s0 + $0x1a] sm:$0x3]
    %v94 = vld [vmem:[%s0 + $0x22] sm:$0x3]
    %v95 = vld [vmem:[%s0 + $0x2a] sm:$0x3]
    %v96 = vld [vmem:[%s0 + $0x32] sm:$0x3]
    %v97 = vld [vmem:[%s0 + $0x3a] sm:$0x3]
    %v98 = vunpack.c.l.bf16 %v90
    %v99 = vunpack.c.l.bf16 %v91
    %v100 = vunpack.c.l.bf16 %v92
    %v101 = vunpack.c.l.bf16 %v93
    %v102 = vunpack.c.l.bf16 %v94
    %v103 = vunpack.c.l.bf16 %v95
    %v104 = vunpack.c.l.bf16 %v96
    %v105 = vunpack.c.l.bf16 %v97
    %s106 = sld [smem:[#allocation4 + $0x1]]
    %v107 = vstv %s106
    %v108 = vmul.f32 %v107, %v98
    %v109 = vmul.f32 %v107, %v99
    %v110 = vmul.f32 %v107, %v100
    %v111 = vmul.f32 %v107, %v101
    %v112 = vmul.f32 %v107, %v102
    %v113 = vmul.f32 %v107, %v103
    %v114 = vmul.f32 %v107, %v104
    %v115 = vmul.f32 %v107, %v105
    %v116 = vadd.f32 %v72, %v108
    %v117 = vadd.f32 %v73, %v109
    %v118 = vadd.f32 %v74, %v110
    %v119 = vadd.f32 %v75, %v111
    %v120 = vadd.f32 %v76, %v112
    %v121 = vadd.f32 %v77, %v113
    %v122 = vadd.f32 %v78, %v114
    %v123 = vadd.f32 %v79, %v115
    %s124 = sld [smem:[#allocation4 + $0x81]]
    %v125 = vstv %s124
    %v126 = vmul.f32 %v125, %v98
    %v127 = vmul.f32 %v125, %v99
    %v128 = vmul.f32 %v125, %v100
    %v129 = vmul.f32 %v125, %v101
    %v130 = vmul.f32 %v125, %v102
    %v131 = vmul.f32 %v125, %v103
    %v132 = vmul.f32 %v125, %v104
    %v133 = vmul.f32 %v125, %v105
    %v134 = vadd.f32 %v82, %v126
    %v135 = vadd.f32 %v83, %v127
    %v136 = vadd.f32 %v84, %v128
    %v137 = vadd.f32 %v85, %v129
    %v138 = vadd.f32 %v86, %v130
    %v139 = vadd.f32 %v87, %v131
    %v140 = vadd.f32 %v88, %v132
    %v141 = vadd.f32 %v89, %v133
    %v142 = vld [vmem:[%s0 + $0x4] sm:$0x3]
    %v143 = vld [vmem:[%s0 + $0xc] sm:$0x3]
    %v144 = vld [vmem:[%s0 + $0x14] sm:$0x3]
    %v145 = vld [vmem:[%s0 + $0x1c] sm:$0x3]
    %v146 = vld [vmem:[%s0 + $0x24] sm:$0x3]
    %v147 = vld [vmem:[%s0 + $0x2c] sm:$0x3]
    %v148 = vld [vmem:[%s0 + $0x34] sm:$0x3]
    %v149 = vld [vmem:[%s0 + $0x3c] sm:$0x3]
    %v150 = vunpack.c.l.bf16 %v142
    %v151 = vunpack.c.l.bf16 %v143
    %v152 = vunpack.c.l.bf16 %v144
    %v153 = vunpack.c.l.bf16 %v145
    %v154 = vunpack.c.l.bf16 %v146
    %v155 = vunpack.c.l.bf16 %v147
    %v156 = vunpack.c.l.bf16 %v148
    %v157 = vunpack.c.l.bf16 %v149
    %s158 = sld [smem:[#allocation4 + $0x2]]
    %v159 = vstv %s158
    %v160 = vmul.f32 %v159, %v150
    %v161 = vmul.f32 %v159, %v151
    %v162 = vmul.f32 %v159, %v152
    %v163 = vmul.f32 %v159, %v153
    %v164 = vmul.f32 %v159, %v154
    %v165 = vmul.f32 %v159, %v155
    %v166 = vmul.f32 %v159, %v156
    %v167 = vmul.f32 %v159, %v157
    %v168 = vadd.f32 %v116, %v160
    %v169 = vadd.f32 %v117, %v161
    %v170 = vadd.f32 %v118, %v162
    %v171 = vadd.f32 %v119, %v163
    %v172 = vadd.f32 %v120, %v164
    %v173 = vadd.f32 %v121, %v165
    %v174 = vadd.f32 %v122, %v166
    %v175 = vadd.f32 %v123, %v167
    %s176 = sld [smem:[#allocation4 + $0x82]]
    %v177 = vstv %s176
    %v178 = vmul.f32 %v177, %v150
    %v179 = vmul.f32 %v177, %v151
    %v180 = vmul.f32 %v177, %v152
    %v181 = vmul.f32 %v177, %v153
    %v182 = vmul.f32 %v177, %v154
    %v183 = vmul.f32 %v177, %v155
    %v184 = vmul.f32 %v177, %v156
    %v185 = vmul.f32 %v177, %v157
    %v186 = vadd.f32 %v134, %v178
    %v187 = vadd.f32 %v135, %v179
    %v188 = vadd.f32 %v136, %v180
    %v189 = vadd.f32 %v137, %v181
    %v190 = vadd.f32 %v138, %v182
    %v191 = vadd.f32 %v139, %v183
    %v192 = vadd.f32 %v140, %v184
    %v193 = vadd.f32 %v141, %v185
    %v194 = vld [vmem:[%s0 + $0x6] sm:$0x3]
    %v195 = vld [vmem:[%s0 + $0xe] sm:$0x3]
    %v196 = vld [vmem:[%s0 + $0x16] sm:$0x3]
    %v197 = vld [vmem:[%s0 + $0x1e] sm:$0x3]
    %v198 = vld [vmem:[%s0 + $0x26] sm:$0x3]
    %v199 = vld [vmem:[%s0 + $0x2e] sm:$0x3]
    %v200 = vld [vmem:[%s0 + $0x36] sm:$0x3]
    %v201 = vld [vmem:[%s0 + $0x3e] sm:$0x3]
    %v202 = vunpack.c.l.bf16 %v194
    %v203 = vunpack.c.l.bf16 %v195
    %v204 = vunpack.c.l.bf16 %v196
    %v205 = vunpack.c.l.bf16 %v197
    %v206 = vunpack.c.l.bf16 %v198
    %v207 = vunpack.c.l.bf16 %v199
    %v208 = vunpack.c.l.bf16 %v200
    %v209 = vunpack.c.l.bf16 %v201
    %s210 = sld [smem:[#allocation4 + $0x3]]
    %v211 = vstv %s210
    %v212 = vmul.f32 %v211, %v202
    %v213 = vmul.f32 %v211, %v203
    %v214 = vmul.f32 %v211, %v204
    %v215 = vmul.f32 %v211, %v205
    %v216 = vmul.f32 %v211, %v206
    %v217 = vmul.f32 %v211, %v207
    %v218 = vmul.f32 %v211, %v208
    %v219 = vmul.f32 %v211, %v209
    %v220 = vadd.f32 %v168, %v212
    %v221 = vadd.f32 %v169, %v213
    %v222 = vadd.f32 %v170, %v214
    %v223 = vadd.f32 %v171, %v215
    %v224 = vadd.f32 %v172, %v216
    %v225 = vadd.f32 %v173, %v217
    %v226 = vadd.f32 %v174, %v218
    %v227 = vadd.f32 %v175, %v219
    %s228 = sld [smem:[#allocation4 + $0x83]]
    %v229 = vstv %s228
    %v230 = vmul.f32 %v229, %v202
    %v231 = vmul.f32 %v229, %v203
    %v232 = vmul.f32 %v229, %v204
    %v233 = vmul.f32 %v229, %v205
    %v234 = vmul.f32 %v229, %v206
    %v235 = vmul.f32 %v229, %v207
    %v236 = vmul.f32 %v229, %v208
    %v237 = vmul.f32 %v229, %v209
    %v238 = vadd.f32 %v186, %v230
    %v239 = vadd.f32 %v187, %v231
    %v240 = vadd.f32 %v188, %v232
    %v241 = vadd.f32 %v189, %v233
    %v242 = vadd.f32 %v190, %v234
    %v243 = vadd.f32 %v191, %v235
    %v244 = vadd.f32 %v192, %v236
    %v245 = vadd.f32 %v193, %v237
    %s246 = sld [smem:[#allocation7]]
    %v247 = vstv %s246
    %v248 = vadd.f32 %v220, %v247
    %v249 = vadd.f32 %v221, %v247
    %v250 = vadd.f32 %v222, %v247
    %v251 = vadd.f32 %v223, %v247
    %v252 = vadd.f32 %v224, %v247
    %v253 = vadd.f32 %v225, %v247
    %v254 = vadd.f32 %v226, %v247
    %v255 = vadd.f32 %v227, %v247
    %vm256 = vcmp.gt.f32.partialorder %v248, 0.0
    %vm257 = vcmp.gt.f32.partialorder %v249, 0.0
    %vm258 = vcmp.gt.f32.partialorder %v250, 0.0
    %vm259 = vcmp.gt.f32.partialorder %v251, 0.0
    %vm260 = vcmp.gt.f32.partialorder %v252, 0.0
    %vm261 = vcmp.gt.f32.partialorder %v253, 0.0
    %vm262 = vcmp.gt.f32.partialorder %v254, 0.0
    %vm263 = vcmp.gt.f32.partialorder %v255, 0.0
    %v264 = vmul.f32 %v248, 0.01
    %v265 = vmul.f32 %v249, 0.01
    %v266 = vmul.f32 %v250, 0.01
    %v267 = vmul.f32 %v251, 0.01
    %v268 = vmul.f32 %v252, 0.01
    %v269 = vmul.f32 %v253, 0.01
    %v270 = vmul.f32 %v254, 0.01
    %v271 = vmul.f32 %v255, 0.01
    %v272 = vsel %vm256, %v248, %v264
    %v273 = vsel %vm257, %v249, %v265
    %v274 = vsel %vm258, %v250, %v266
    %v275 = vsel %vm259, %v251, %v267
    %v276 = vsel %vm260, %v252, %v268
    %v277 = vsel %vm261, %v253, %v269
    %v278 = vsel %vm262, %v254, %v270
    %v279 = vsel %vm263, %v255, %v271
    %v288 = vcombine.low %v272, %v273
    %v289 = vcombine.low %v274, %v275
    %v291 = vunpack.c.l.s4 1983009808
    %v292 = vunpack.c.0.s8 %v291
    %v293 = vlaneseq
    %v294 = vshrl.u32 %v293, 7
    %v295 = vsub.s32 %v292, %v294
    %v296 = vrot.slane %v288, %v295
    %v298 = vunpack.c.l.s4 1983009808
    %v299 = vunpack.c.0.s8 %v298
    %v300 = vlaneseq
    %v301 = vshrl.u32 %v300, 7
    %v302 = vsub.s32 %v299, %v301
    %v303 = vrot.slane %v289, %v302
    %v304 = vcombine.low %v296, %v303
    %v305 = vcombine.high %v296, %v303
    %v306 = vcombine.low %v276, %v277
    %v307 = vcombine.low %v278, %v279
    %v309 = vunpack.c.l.s4 1983009808
    %v310 = vunpack.c.0.s8 %v309
    %v311 = vlaneseq
    %v312 = vshrl.u32 %v311, 7
    %v313 = vsub.s32 %v310, %v312
    %v314 = vrot.slane %v306, %v313
    %v316 = vunpack.c.l.s4 1983009808
    %v317 = vunpack.c.0.s8 %v316
    %v318 = vlaneseq
    %v319 = vshrl.u32 %v318, 7
    %v320 = vsub.s32 %v317, %v319
    %v321 = vrot.slane %v307, %v320
    %v322 = vcombine.low %v314, %v321
    %v323 = vcombine.high %v314, %v321
    %v328 = vpack.c.bf16 %v322, %v304
    %v329 = vpack.c.bf16 %v323, %v305
    %330 = vst [vmem:[#allocation2] sm:$0xff] %v328
    %331 = vst [vmem:[#allocation2 + $0x8] sm:$0xff] %v329
    %s332 = sld [smem:[#allocation7 + $0x1]]
    %v333 = vstv %s332
    %v334 = vadd.f32 %v238, %v333
    %v335 = vadd.f32 %v239, %v333
    %v336 = vadd.f32 %v240, %v333
    %v337 = vadd.f32 %v241, %v333
    %v338 = vadd.f32 %v242, %v333
    %v339 = vadd.f32 %v243, %v333
    %v340 = vadd.f32 %v244, %v333
    %v341 = vadd.f32 %v245, %v333
    %vm342 = vcmp.gt.f32.partialorder %v334, 0.0
    %vm343 = vcmp.gt.f32.partialorder %v335, 0.0
    %vm344 = vcmp.gt.f32.partialorder %v336, 0.0
    %vm345 = vcmp.gt.f32.partialorder %v337, 0.0
    %vm346 = vcmp.gt.f32.partialorder %v338, 0.0
    %vm347 = vcmp.gt.f32.partialorder %v339, 0.0
    %vm348 = vcmp.gt.f32.partialorder %v340, 0.0
    %vm349 = vcmp.gt.f32.partialorder %v341, 0.0
    %v350 = vmul.f32 %v334, 0.01
    %v351 = vmul.f32 %v335, 0.01
    %v352 = vmul.f32 %v336, 0.01
    %v353 = vmul.f32 %v337, 0.01
    %v354 = vmul.f32 %v338, 0.01
    %v355 = vmul.f32 %v339, 0.01
    %v356 = vmul.f32 %v340, 0.01
    %v357 = vmul.f32 %v341, 0.01
    %v358 = vsel %vm342, %v334, %v350
    %v359 = vsel %vm343, %v335, %v351
    %v360 = vsel %vm344, %v336, %v352
    %v361 = vsel %vm345, %v337, %v353
    %v362 = vsel %vm346, %v338, %v354
    %v363 = vsel %vm347, %v339, %v355
    %v364 = vsel %vm348, %v340, %v356
    %v365 = vsel %vm349, %v341, %v357
    %v374 = vcombine.low %v358, %v359
    %v375 = vcombine.low %v360, %v361
    %v377 = vunpack.c.l.s4 1983009808
    %v378 = vunpack.c.0.s8 %v377
    %v379 = vlaneseq
    %v380 = vshrl.u32 %v379, 7
    %v381 = vsub.s32 %v378, %v380
    %v382 = vrot.slane %v374, %v381
    %v384 = vunpack.c.l.s4 1983009808
    %v385 = vunpack.c.0.s8 %v384
    %v386 = vlaneseq
    %v387 = vshrl.u32 %v386, 7
    %v388 = vsub.s32 %v385, %v387
    %v389 = vrot.slane %v375, %v388
    %v390 = vcombine.low %v382, %v389
    %v391 = vcombine.high %v382, %v389
    %v392 = vcombine.low %v362, %v363
    %v393 = vcombine.low %v364, %v365
    %v395 = vunpack.c.l.s4 1983009808
    %v396 = vunpack.c.0.s8 %v395
    %v397 = vlaneseq
    %v398 = vshrl.u32 %v397, 7
    %v399 = vsub.s32 %v396, %v398
    %v400 = vrot.slane %v392, %v399
    %v402 = vunpack.c.l.s4 1983009808
    %v403 = vunpack.c.0.s8 %v402
    %v404 = vlaneseq
    %v405 = vshrl.u32 %v404, 7
    %v406 = vsub.s32 %v403, %v405
    %v407 = vrot.slane %v393, %v406
    %v408 = vcombine.low %v400, %v407
    %v409 = vcombine.high %v400, %v407
    %v414 = vpack.c.bf16 %v408, %v390
    %v415 = vpack.c.bf16 %v409, %v391
    %416 = vst [vmem:[#allocation2 + $0x10] sm:$0xff] %v414
    %417 = vst [vmem:[#allocation2 + $0x18] sm:$0xff] %v415
    %v418 = vld [vmem:[#allocation2] sm:$0xff]
    %v419 = vld [vmem:[#allocation2 + $0x8] sm:$0xff]
    %v420 = vld [vmem:[#allocation2 + $0x10] sm:$0xff]
    %v421 = vld [vmem:[#allocation2 + $0x18] sm:$0xff]
    %v422 = vld [vmem:[%s3] sm:$0xf]
    %v423 = vld [vmem:[%s3 + $0x4] sm:$0xf]
    %v424 = vld [vmem:[%s3 + $0x8] sm:$0xf]
    %v425 = vld [vmem:[%s3 + $0xc] sm:$0xf]
    %v426 = vld [vmem:[%s3 + $0x10] sm:$0xf]
    %v427 = vld [vmem:[%s3 + $0x14] sm:$0xf]
    %v428 = vld [vmem:[%s3 + $0x18] sm:$0xf]
    %v429 = vld [vmem:[%s3 + $0x1c] sm:$0xf]
    %v430 = vld [vmem:[%s3 + $0x20] sm:$0xf]
    %v431 = vld [vmem:[%s3 + $0x24] sm:$0xf]
    %v432 = vld [vmem:[%s3 + $0x28] sm:$0xf]
    %v433 = vld [vmem:[%s3 + $0x2c] sm:$0xf]
    %v434 = vld [vmem:[%s3 + $0x30] sm:$0xf]
    %v435 = vld [vmem:[%s3 + $0x34] sm:$0xf]
    %v436 = vld [vmem:[%s3 + $0x38] sm:$0xf]
    %v437 = vld [vmem:[%s3 + $0x3c] sm:$0xf]
    %v438 = vld [vmem:[%s3 + $0x40] sm:$0xf]
    %v439 = vld [vmem:[%s3 + $0x44] sm:$0xf]
    %v440 = vld [vmem:[%s3 + $0x48] sm:$0xf]
    %v441 = vld [vmem:[%s3 + $0x4c] sm:$0xf]
    %v442 = vld [vmem:[%s3 + $0x50] sm:$0xf]
    %v443 = vld [vmem:[%s3 + $0x54] sm:$0xf]
    %v444 = vld [vmem:[%s3 + $0x58] sm:$0xf]
    %v445 = vld [vmem:[%s3 + $0x5c] sm:$0xf]
    %v446 = vld [vmem:[%s3 + $0x60] sm:$0xf]
    %v447 = vld [vmem:[%s3 + $0x64] sm:$0xf]
    %v448 = vld [vmem:[%s3 + $0x68] sm:$0xf]
    %v449 = vld [vmem:[%s3 + $0x6c] sm:$0xf]
    %v450 = vld [vmem:[%s3 + $0x70] sm:$0xf]
    %v451 = vld [vmem:[%s3 + $0x74] sm:$0xf]
    %v452 = vld [vmem:[%s3 + $0x78] sm:$0xf]
    %v453 = vld [vmem:[%s3 + $0x7c] sm:$0xf]
    %v454 = vld [vmem:[%s3 + $0x80] sm:$0xf]
    %v455 = vld [vmem:[%s3 + $0x84] sm:$0xf]
    %v456 = vld [vmem:[%s3 + $0x88] sm:$0xf]
    %v457 = vld [vmem:[%s3 + $0x8c] sm:$0xf]
    %v458 = vld [vmem:[%s3 + $0x90] sm:$0xf]
    %v459 = vld [vmem:[%s3 + $0x94] sm:$0xf]
    %v460 = vld [vmem:[%s3 + $0x98] sm:$0xf]
    %v461 = vld [vmem:[%s3 + $0x9c] sm:$0xf]
    %v462 = vld [vmem:[%s3 + $0xa0] sm:$0xf]
    %v463 = vld [vmem:[%s3 + $0xa4] sm:$0xf]
    %v464 = vld [vmem:[%s3 + $0xa8] sm:$0xf]
    %v465 = vld [vmem:[%s3 + $0xac] sm:$0xf]
    %v466 = vld [vmem:[%s3 + $0xb0] sm:$0xf]
    %v467 = vld [vmem:[%s3 + $0xb4] sm:$0xf]
    %v468 = vld [vmem:[%s3 + $0xb8] sm:$0xf]
    %v469 = vld [vmem:[%s3 + $0xbc] sm:$0xf]
    %v470 = vld [vmem:[%s3 + $0xc0] sm:$0xf]
    %v471 = vld [vmem:[%s3 + $0xc4] sm:$0xf]
    %v472 = vld [vmem:[%s3 + $0xc8] sm:$0xf]
    %v473 = vld [vmem:[%s3 + $0xcc] sm:$0xf]
    %v474 = vld [vmem:[%s3 + $0xd0] sm:$0xf]
    %v475 = vld [vmem:[%s3 + $0xd4] sm:$0xf]
    %v476 = vld [vmem:[%s3 + $0xd8] sm:$0xf]
    %v477 = vld [vmem:[%s3 + $0xdc] sm:$0xf]
    %v478 = vld [vmem:[%s3 + $0xe0] sm:$0xf]
    %v479 = vld [vmem:[%s3 + $0xe4] sm:$0xf]
    %v480 = vld [vmem:[%s3 + $0xe8] sm:$0xf]
    %v481 = vld [vmem:[%s3 + $0xec] sm:$0xf]
    %v482 = vld [vmem:[%s3 + $0xf0] sm:$0xf]
    %v483 = vld [vmem:[%s3 + $0xf4] sm:$0xf]
    %v484 = vld [vmem:[%s3 + $0xf8] sm:$0xf]
    %v485 = vld [vmem:[%s3 + $0xfc] sm:$0xf]
    %v486 = vld [vmem:[%s4] sm:$0x1]
    %v488 = vlaneseq
    %v489 = vshrl.u32 %v488, 7
    %v490 = vsub.s32 0, %v489
    %v491 = vrot.slane %v486, %v490
    %v557 = vunpack.c.l.b16 %v422
    %v558 = vunpack.c.l.b16 %v423
    %v559 = vunpack.c.l.b16 %v424
    %v560 = vunpack.c.l.b16 %v425
    %v561 = vunpack.c.l.b16 %v426
    %v562 = vunpack.c.l.b16 %v427
    %v563 = vunpack.c.l.b16 %v428
    %v564 = vunpack.c.l.b16 %v429
    %v565 = vunpack.c.l.b16 %v430
    %v566 = vunpack.c.l.b16 %v431
    %v567 = vunpack.c.l.b16 %v432
    %v568 = vunpack.c.l.b16 %v433
    %v569 = vunpack.c.l.b16 %v434
    %v570 = vunpack.c.l.b16 %v435
    %v571 = vunpack.c.l.b16 %v436
    %v572 = vunpack.c.l.b16 %v437
    %v573 = vunpack.c.l.b16 %v438
    %v574 = vunpack.c.l.b16 %v439
    %v575 = vunpack.c.l.b16 %v440
    %v576 = vunpack.c.l.b16 %v441
    %v577 = vunpack.c.l.b16 %v442
    %v578 = vunpack.c.l.b16 %v443
    %v579 = vunpack.c.l.b16 %v444
    %v580 = vunpack.c.l.b16 %v445
    %v581 = vunpack.c.l.b16 %v446
    %v582 = vunpack.c.l.b16 %v447
    %v583 = vunpack.c.l.b16 %v448
    %v584 = vunpack.c.l.b16 %v449
    %v585 = vunpack.c.l.b16 %v450
    %v586 = vunpack.c.l.b16 %v451
    %v587 = vunpack.c.l.b16 %v452
    %v588 = vunpack.c.l.b16 %v453
    %v589 = vunpack.c.l.b16 %v454
    %v590 = vunpack.c.l.b16 %v455
    %v591 = vunpack.c.l.b16 %v456
    %v592 = vunpack.c.l.b16 %v457
    %v593 = vunpack.c.l.b16 %v458
    %v594 = vunpack.c.l.b16 %v459
    %v595 = vunpack.c.l.b16 %v460
    %v596 = vunpack.c.l.b16 %v461
    %v597 = vunpack.c.l.b16 %v462
    %v598 = vunpack.c.l.b16 %v463
    %v599 = vunpack.c.l.b16 %v464
    %v600 = vunpack.c.l.b16 %v465
    %v601 = vunpack.c.l.b16 %v466
    %v602 = vunpack.c.l.b16 %v467
    %v603 = vunpack.c.l.b16 %v468
    %v604 = vunpack.c.l.b16 %v469
    %v605 = vunpack.c.l.b16 %v470
    %v606 = vunpack.c.l.b16 %v471
    %v607 = vunpack.c.l.b16 %v472
    %v608 = vunpack.c.l.b16 %v473
    %v609 = vunpack.c.l.b16 %v474
    %v610 = vunpack.c.l.b16 %v475
    %v611 = vunpack.c.l.b16 %v476
    %v612 = vunpack.c.l.b16 %v477
    %v613 = vunpack.c.l.b16 %v478
    %v614 = vunpack.c.l.b16 %v479
    %v615 = vunpack.c.l.b16 %v480
    %v616 = vunpack.c.l.b16 %v481
    %v617 = vunpack.c.l.b16 %v482
    %v618 = vunpack.c.l.b16 %v483
    %v619 = vunpack.c.l.b16 %v484
    %v620 = vunpack.c.l.b16 %v485
    %v621 = vpack.c.b16 %v558, %v557
    %v622 = vpack.c.b16 %v560, %v559
    %v623 = vpack.c.b16 %v562, %v561
    %v624 = vpack.c.b16 %v564, %v563
    %v625 = vpack.c.b16 %v566, %v565
    %v626 = vpack.c.b16 %v568, %v567
    %v627 = vpack.c.b16 %v570, %v569
    %v628 = vpack.c.b16 %v572, %v571
    %v629 = vpack.c.b16 %v574, %v573
    %v630 = vpack.c.b16 %v576, %v575
    %v631 = vpack.c.b16 %v578, %v577
    %v632 = vpack.c.b16 %v580, %v579
    %v633 = vpack.c.b16 %v582, %v581
    %v634 = vpack.c.b16 %v584, %v583
    %v635 = vpack.c.b16 %v586, %v585
    %v636 = vpack.c.b16 %v588, %v587
    %v637 = vpack.c.b16 %v590, %v589
    %v638 = vpack.c.b16 %v592, %v591
    %v639 = vpack.c.b16 %v594, %v593
    %v640 = vpack.c.b16 %v596, %v595
    %v641 = vpack.c.b16 %v598, %v597
    %v642 = vpack.c.b16 %v600, %v599
    %v643 = vpack.c.b16 %v602, %v601
    %v644 = vpack.c.b16 %v604, %v603
    %v645 = vpack.c.b16 %v606, %v605
    %v646 = vpack.c.b16 %v608, %v607
    %v647 = vpack.c.b16 %v610, %v609
    %v648 = vpack.c.b16 %v612, %v611
    %v649 = vpack.c.b16 %v614, %v613
    %v650 = vpack.c.b16 %v616, %v615
    %v651 = vpack.c.b16 %v618, %v617
    %v652 = vpack.c.b16 %v620, %v619
    %685 = vmatprep.subr.bf16.mxu0 0
    %686 = vmatpush1.bf16.msra.mxu0 %v621
    %687 = vmatprep.subr.bf16.mxu0 0
    %688 = vmatpush1.bf16.msra.mxu0 %v622
    %689 = vmatprep.subr.bf16.mxu0 0
    %690 = vmatpush1.bf16.msra.mxu0 %v623
    %691 = vmatprep.subr.bf16.mxu0 0
    %692 = vmatpush1.bf16.msra.mxu0 %v624
    %693 = vmatprep.subr.bf16.mxu0 0
    %694 = vmatpush1.bf16.msra.mxu0 %v625
    %695 = vmatprep.subr.bf16.mxu0 0
    %696 = vmatpush1.bf16.msra.mxu0 %v626
    %697 = vmatprep.subr.bf16.mxu0 0
    %698 = vmatpush1.bf16.msra.mxu0 %v627
    %699 = vmatprep.subr.bf16.mxu0 0
    %700 = vmatpush1.bf16.msra.mxu0 %v628
    %701 = vmatprep.subr.bf16.mxu0 0
    %702 = vmatpush1.bf16.msra.mxu0 %v629
    %703 = vmatprep.subr.bf16.mxu0 0
    %704 = vmatpush1.bf16.msra.mxu0 %v630
    %705 = vmatprep.subr.bf16.mxu0 0
    %706 = vmatpush1.bf16.msra.mxu0 %v631
    %707 = vmatprep.subr.bf16.mxu0 0
    %708 = vmatpush1.bf16.msra.mxu0 %v632
    %709 = vmatprep.subr.bf16.mxu0 0
    %710 = vmatpush1.bf16.msra.mxu0 %v633
    %711 = vmatprep.subr.bf16.mxu0 0
    %712 = vmatpush1.bf16.msra.mxu0 %v634
    %713 = vmatprep.subr.bf16.mxu0 0
    %714 = vmatpush1.bf16.msra.mxu0 %v635
    %715 = vmatprep.subr.bf16.mxu0 0
    %716 = vmatpush1.bf16.msra.mxu0 %v636
    %717 = vmatprep.mubr.bf16.mxu0 %v419
    %718 = vmatmul.mubr.bf16.gmra.mrb[0].mxu0 %v418
    %v719 = vpop.f32.mrb[0].mxu0
    %v720 = vadd.f32 %v491, %v719
    %v721 = vpop.f32.mrb[0].mxu0
    %v722 = vpop.f32.mrb[0].mxu0
    %v723 = vadd.f32 %v491, %v722
    %v724 = vpop.f32.mrb[0].mxu0
    %725 = vdwg.mxu0
    %726 = vmatprep.subr.bf16.mxu0 0
    %727 = vmatpush1.bf16.msra.mxu0 %v637
    %728 = vmatprep.subr.bf16.mxu0 0
    %729 = vmatpush1.bf16.msra.mxu0 %v638
    %730 = vmatprep.subr.bf16.mxu0 0
    %731 = vmatpush1.bf16.msra.mxu0 %v639
    %732 = vmatprep.subr.bf16.mxu0 0
    %733 = vmatpush1.bf16.msra.mxu0 %v640
    %734 = vmatprep.subr.bf16.mxu0 0
    %735 = vmatpush1.bf16.msra.mxu0 %v641
    %736 = vmatprep.subr.bf16.mxu0 0
    %737 = vmatpush1.bf16.msra.mxu0 %v642
    %738 = vmatprep.subr.bf16.mxu0 0
    %739 = vmatpush1.bf16.msra.mxu0 %v643
    %740 = vmatprep.subr.bf16.mxu0 0
    %741 = vmatpush1.bf16.msra.mxu0 %v644
    %742 = vmatprep.subr.bf16.mxu0 0
    %743 = vmatpush1.bf16.msra.mxu0 %v645
    %744 = vmatprep.subr.bf16.mxu0 0
    %745 = vmatpush1.bf16.msra.mxu0 %v646
    %746 = vmatprep.subr.bf16.mxu0 0
    %747 = vmatpush1.bf16.msra.mxu0 %v647
    %748 = vmatprep.subr.bf16.mxu0 0
    %749 = vmatpush1.bf16.msra.mxu0 %v648
    %750 = vmatprep.subr.bf16.mxu0 0
    %751 = vmatpush1.bf16.msra.mxu0 %v649
    %752 = vmatprep.subr.bf16.mxu0 0
    %753 = vmatpush1.bf16.msra.mxu0 %v650
    %754 = vmatprep.subr.bf16.mxu0 0
    %755 = vmatpush1.bf16.msra.mxu0 %v651
    %756 = vmatprep.subr.bf16.mxu0 0
    %757 = vmatpush1.bf16.msra.mxu0 %v652
    %758 = vmatprep.mubr.bf16.mxu0 %v421
    %759 = vmatmul.mubr.bf16.gmra.mrb[0].mxu0 %v420
    %v760 = vpop.f32.mrb[0].mxu0
    %v761 = vadd.f32 %v720, %v760
    %v762 = vpop.f32.mrb[0].mxu0
    %v763 = vpop.f32.mrb[0].mxu0
    %v764 = vadd.f32 %v723, %v763
    %v765 = vpop.f32.mrb[0].mxu0
    %766 = vdwg.mxu0
    %vm767 = vcmp.gt.f32.partialorder %v761, 0.0
    %vm768 = vcmp.gt.f32.partialorder %v764, 0.0
    %v769 = vmul.f32 %v761, 0.01
    %v770 = vmul.f32 %v764, 0.01
    %v771 = vsel %vm767, %v761, %v769
    %v772 = vsel %vm768, %v764, %v770
    %v773 = vld [vmem:[%s5] sm:$0x1]
    %s774 = sld [smem:[#allocation3]]
    %v775 = vstv %s774
    %vm776 = vcmask 261120
    %v778 = vsel %vm776, %v773, 0
    %v781 = vsel %vm776, %v771, 0
    %v784 = vsel %vm776, %v772, 0
    %786 = vmatprep.subr.mxu0 0.0
    %787 = vmatpush1.xpose.msra.mxu0 %v781
    %788 = vmatprep.subr.mxu0 0.0
    %789 = vmatpush1.xpose.msra.mxu0 %v784
    %790 = vmatprep.subr.mxu0 0.0
    %791 = vmatpush1.xpose.msra.mxu0 0.0
    %792 = vmatprep.subr.mxu0 0.0
    %793 = vmatpush1.xpose.msra.mxu0 0.0
    %794 = vmatprep.subr.mxu0 0.0
    %795 = vmatpush1.xpose.msra.mxu0 0.0
    %796 = vmatprep.subr.mxu0 0.0
    %797 = vmatpush1.xpose.msra.mxu0 0.0
    %798 = vmatprep.subr.mxu0 0.0
    %799 = vmatpush1.xpose.msra.mxu0 0.0
    %800 = vmatprep.subr.mxu0 0.0
    %801 = vmatpush1.xpose.msra.mxu0 0.0
    %802 = vmatprep.subr.mxu0 0.0
    %803 = vmatpush1.xpose.msra.mxu0 0.0
    %804 = vmatprep.subr.mxu0 0.0
    %805 = vmatpush1.xpose.msra.mxu0 0.0
    %806 = vmatprep.subr.mxu0 0.0
    %807 = vmatpush1.xpose.msra.mxu0 0.0
    %808 = vmatprep.subr.mxu0 0.0
    %809 = vmatpush1.xpose.msra.mxu0 0.0
    %810 = vmatprep.subr.mxu0 0.0
    %811 = vmatpush1.xpose.msra.mxu0 0.0
    %812 = vmatprep.subr.mxu0 0.0
    %813 = vmatpush1.xpose.msra.mxu0 0.0
    %814 = vmatprep.subr.mxu0 0.0
    %815 = vmatpush1.xpose.msra.mxu0 0.0
    %816 = vmatprep.subr.mxu0 0.0
    %817 = vmatpush1.xpose.msra.mxu0 0.0
    %818 = vmatprep.subr.mxu0 0.0
    %819 = vmatpush1.xpose.msra.mxu0 0.0
    %820 = vmatprep.subr.mxu0 0.0
    %821 = vmatpush1.xpose.msra.mxu0 0.0
    %822 = vmatprep.subr.mxu0 0.0
    %823 = vmatpush1.xpose.msra.mxu0 0.0
    %824 = vmatprep.subr.mxu0 0.0
    %825 = vmatpush1.xpose.msra.mxu0 0.0
    %826 = vmatprep.subr.mxu0 0.0
    %827 = vmatpush1.xpose.msra.mxu0 0.0
    %828 = vmatprep.subr.mxu0 0.0
    %829 = vmatpush1.xpose.msra.mxu0 0.0
    %830 = vmatprep.subr.mxu0 0.0
    %831 = vmatpush1.xpose.msra.mxu0 0.0
    %832 = vmatprep.subr.mxu0 0.0
    %833 = vmatpush1.xpose.msra.mxu0 0.0
    %834 = vmatprep.subr.mxu0 0.0
    %835 = vmatpush1.xpose.msra.mxu0 0.0
    %836 = vmatprep.subr.mxu0 0.0
    %837 = vmatpush1.xpose.msra.mxu0 0.0
    %838 = vmatprep.subr.mxu0 0.0
    %839 = vmatpush1.xpose.msra.mxu0 0.0
    %840 = vmatprep.subr.mxu0 0.0
    %841 = vmatpush1.xpose.msra.mxu0 0.0
    %842 = vmatprep.subr.mxu0 0.0
    %843 = vmatpush1.xpose.msra.mxu0 0.0
    %844 = vmatprep.subr.mxu0 0.0
    %845 = vmatpush1.xpose.msra.mxu0 0.0
    %846 = vmatprep.subr.mxu0 0.0
    %847 = vmatpush1.xpose.msra.mxu0 0.0
    %848 = vmatprep.subr.mxu0 0.0
    %849 = vmatpush1.xpose.msra.mxu0 0.0
    %850 = vmatprep.mubr.f32.mxu0 0.0
    %851 = vmatmul.mubr.f32.gmra.mrb[0].mxu0 %v778
    %v852 = vpop.f32.mrb[0].mxu0
    %v853 = vadd.f32 %v775, %v852
    %v854 = vpop.f32.mrb[0].mxu0
    %855 = vdwg.mxu0
    %v856 = vtanh.pop %v853
    %vm857 = vcmask 122880
    %858 = vst.msk [vmem:[#allocation9] sm:$0x1] %vm857, %v856
    // Predicated region
    $region38: #{tpu_custom_call.1} parent=1 // pred_check
      _
    $region39: #{tpu_custom_call.1} parent=1 // pred_check_branch
      %860 = sbr.rel (0) target = $region41
    $region40: #{tpu_custom_call.1} parent=1 // pred_region
      %s862 = ssub.s32 16, 16
      %863 = vsyncadd [#allocation5], %s862
      %s865 = sshll.u32 [#allocation9], 4
      %s866 = int_to_ptr.vmem [resolvable:$true] %s865
      %868 = dma.vmem_to_hbm [thread:$0]  %s866, 16, %s7, [#allocation5]
    $region41: #{tpu_custom_call.1} parent=1 // pred_fallthru
      _
    // Predicated region
    $region42: #{tpu_custom_call.1} parent=1 // pred_check
      _
    $region43: #{tpu_custom_call.1} parent=1 // pred_check_branch
      %870 = sbr.rel (0) target = $region45
    $region44: #{tpu_custom_call.1} parent=1 // pred_region
      %871 = dma.done [#allocation5], 16
    $region45: #{tpu_custom_call.1} parent=1 // pred_fallthru
      _
    %872 = vsyncpa [#allocation5], 1
    %873 = vsyncpa [#allocation6], 1
    %874 = vsyncpa [#allocation8], 1

</llo_original>
